<compile_context>
chip_gen: v6e
topology: v6e:2x2x1
jax: 0.10.0
libtpu: 0.0.40
codegen_flags: <defaults>
</compile_context>

<pallas_src>
import jax
import jax.numpy as jnp
import numpy as np
from jax import lax
from jax.experimental import pallas as pl
from jax.experimental.pallas import tpu as pltpu


def _round_up(x, m):
    return ((x + m - 1) // m) * m


def _make_block_kernel(K, S, Cin_p, Cout_p, L_out, Lp, Bt, compute_dtype):
    p = (K - 1) // 2          # left halo of both convs

    def kernel(xph_ref, w1s_ref, b1s_ref, w2_ref, b2_ref, out_ref,
               xs1_ref, xs2_ref):
        # ---- gather conv1 taps (incl. the shortcut's 1x1 tap, k == p) into xs1 ----
        # xs1[k*Cin_p + c, bi*Lp + t] = x_pad[bi, c, S*t + k]
        # (row blocks are sublane-aligned, column blocks are lane-aligned -> clean stores)
        for k in range(K):
            q, r = divmod(k, S)                   # S*t + k == S*(t + q) + r
            for bi in range(Bt):
                xs1_ref[k * Cin_p:(k + 1) * Cin_p, bi * Lp:(bi + 1) * Lp] = (
                    xph_ref[bi, r, :, q:q + Lp])

        # ---- conv1(+BN1) and shortcut(+BN) fused into ONE MXU matmul ----
        z = jnp.dot(w1s_ref[...], xs1_ref[...],
                    preferred_element_type=jnp.float32) + b1s_ref[...]
        y1 = jnp.maximum(z[:Cout_p], 0.0)         # (Cout_p, Bt*Lp)  conv1 -> BN1 -> ReLU
        sc = z[Cout_p:]                           # (Cout_p, Bt*Lp)  shortcut -> BN

        # ---- conv2 RHS: zero the slab once, then scatter shifted VALID windows of y1.
        # Halo columns (t+d < 0) and tail columns (t+d >= L_out) stay zero, so y1's
        # garbage columns >= L_out never leak into valid outputs (no iota mask needed).
        xs2_ref[...] = jnp.zeros_like(xs2_ref)
        y1c = y1.astype(compute_dtype)            # single cast; scratch is compute_dtype
        for k in range(K):
            d = k - p                             # tap k of conv2 reads y1_true[:, t + d]
            dst_lo = max(0, -d)
            dst_hi = min(Lp, L_out - d)
            width = dst_hi - dst_lo
            if width <= 0:
                continue
            src_lo = dst_lo + d
            for bi in range(Bt):
                xs2_ref[k * Cout_p:(k + 1) * Cout_p,
                        bi * Lp + dst_lo:bi * Lp + dst_hi] = (
                    y1c[:, bi * Lp + src_lo:bi * Lp + src_lo + width])

        # ---- conv2(+BN2), residual add, output ReLU ----
        y2 = jnp.dot(w2_ref[...], xs2_ref[...],
                     preferred_element_type=jnp.float32) + b2_ref[...]
        out = jnp.maximum(y2 + sc, 0.0)           # (Cout_p, Bt*Lp) f32

        for bi in range(Bt):                      # lane-aligned per-sample slabs
            out_ref[bi] = out[:, bi * Lp:(bi + 1) * Lp].astype(out_ref.dtype)

    return kernel


def resnet_basic_block(x, params, *, kernel_size, stride, batch_block=1,
                       compute_dtype=jnp.float32, out_dtype=None,
                       vmem_limit_bytes=64 * 1024 * 1024):
    """x: (B, Cin, L).  Returns (B, Cout, L_out) in `out_dtype` (default: x.dtype)."""
    B, Cin, L = x.shape
    K, S = int(kernel_size), int(stride)
    p = (K - 1) // 2
    L_out = (L + 2 * p - K) // S + 1
    Cout = params["w1"].shape[0]
    out_dtype = x.dtype if out_dtype is None else out_dtype

    # sublane-aligned channel counts (8 for f32, 16 for bf16) and lane-dense width
    sub = 16 if compute_dtype == jnp.bfloat16 else 8
    Cin_p = _round_up(Cin, sub)
    Cout_p = _round_up(Cout, sub)
    Lp = _round_up(L_out, 128)

    # ---- fold eval-mode BatchNorm into conv weights + per-channel bias ----
    def bn_fold(g, b, m, v, eps=1e-5):
        s = (g / jnp.sqrt(v + eps)).astype(jnp.float32)
        return s, (b - m * s).astype(jnp.float32)

    s1, b1 = bn_fold(*params["bn1"])
    s2, b2 = bn_fold(*params["bn2"])
    ss, bs = bn_fold(*params["bns"])

    w1 = params["w1"].astype(jnp.float32) * s1[:, None, None]       # (Cout, Cin, K)
    w2 = params["w2"].astype(jnp.float32) * s2[:, None, None]       # (Cout, Cout, K)
    ws = params["ws"][:, :, 0].astype(jnp.float32) * ss[:, None]    # (Cout, Cin)

    # channel-padded, tap-flattened weights; column index = k*C_p + c matches scratch rows
    w1f = jnp.zeros((Cout_p, K, Cin_p), jnp.float32).at[:Cout, :, :Cin].set(
        jnp.transpose(w1, (0, 2, 1))).reshape(Cout_p, K * Cin_p)
    w2f = jnp.zeros((Cout_p, K, Cout_p), jnp.float32).at[:Cout, :, :Cout].set(
        jnp.transpose(w2, (0, 2, 1))).reshape(Cout_p, K * Cout_p)

    # shortcut (1x1, stride S) reads exactly conv1's tap k=p -> stack it as extra
    # output rows of the conv1 matmul (one fused MXU matmul for conv1 + shortcut)
    w1s = jnp.zeros((2 * Cout_p, K * Cin_p), jnp.float32)
    w1s = w1s.at[:Cout_p].set(w1f)
    w1s = w1s.at[Cout_p:Cout_p + Cout, p * Cin_p:p * Cin_p + Cin].set(ws)
    w1s = w1s.astype(compute_dtype)
    w2f = w2f.astype(compute_dtype)

    b1s = jnp.zeros((2 * Cout_p, 1), jnp.float32)
    b1s = b1s.at[:Cout, 0].set(b1).at[Cout_p:Cout_p + Cout, 0].set(bs)
    b2p = jnp.zeros((Cout_p, 1), jnp.float32).at[:Cout, 0].set(b2)

    # ---- batch blocking (Bt samples stacked along the matmul lane axis) ----
    Bt = max(1, min(int(batch_block), B))
    B_pad = _round_up(B, Bt)

    # ---- polyphase layout of the zero-padded input (no Kx im2col duplication) ----
    Jph = max(Lp + (K - 1) // S, -(-(L + p) // S))
    Ltot = S * Jph
    x_p = jnp.pad(x.astype(compute_dtype),
                  ((0, B_pad - B), (0, Cin_p - Cin), (p, Ltot - L - p)))
    if S == 1:
        x_ph = x_p.reshape(B_pad, 1, Cin_p, Jph)          # no transpose pass needed
        S_ph = 1
    else:
        # x_ph[b, r, c, j] = x_pad[b, c, S*j + r]
        x_ph = x_p.reshape(B_pad, Cin_p, Jph, S).transpose(0, 3, 1, 2)
        S_ph = S

    # clamp the VMEM budget to the device (v7x has 64 MiB physical, v5e/v6e 128 MiB)
    try:
        cap = pltpu.get_tpu_info().vmem_capacity_bytes
        vmem_limit_bytes = min(int(vmem_limit_bytes), int(0.75 * cap))
    except Exception:
        vmem_limit_bytes = int(vmem_limit_bytes)

    kernel = _make_block_kernel(K, S, Cin_p, Cout_p, L_out, Lp, Bt, compute_dtype)

    out = pl.pallas_call(
        kernel,
        out_shape=jax.ShapeDtypeStruct((B_pad, Cout_p, Lp), out_dtype),
        grid=(B_pad // Bt,),
        in_specs=[
            pl.BlockSpec((Bt, S_ph, Cin_p, Jph), lambda i: (i, 0, 0, 0)),   # polyphase x
            pl.BlockSpec((2 * Cout_p, K * Cin_p), lambda i: (0, 0)),        # conv1+shortcut W
            pl.BlockSpec((2 * Cout_p, 1), lambda i: (0, 0)),                # conv1+shortcut bias
            pl.BlockSpec((Cout_p, K * Cout_p), lambda i: (0, 0)),           # conv2 W
            pl.BlockSpec((Cout_p, 1), lambda i: (0, 0)),                    # conv2 bias
        ],
        out_specs=pl.BlockSpec((Bt, Cout_p, Lp), lambda i: (i, 0, 0)),
        scratch_shapes=[
            pltpu.VMEM((K * Cin_p, Bt * Lp), compute_dtype),    # conv1 / shortcut RHS
            pltpu.VMEM((K * Cout_p, Bt * Lp), compute_dtype),   # conv2 RHS (halo via zeros)
        ],
        compiler_params=pltpu.CompilerParams(
            dimension_semantics=("parallel",),
            vmem_limit_bytes=vmem_limit_bytes),
    )(x_ph, w1s, b1s, w2f, b2p)

    return out[:B, :Cout, :L_out]


# ---------------- pure-JAX reference (for correctness check) ----------------
def _conv1d(x, w, stride, pad):
    return lax.conv_general_dilated(
        x, w, window_strides=(stride,), padding=[(pad, pad)],
        dimension_numbers=("NCH", "OIH", "NCH"))


def _reference(x, params, K, S, eps=1e-5):
    def bn(y, g, b, m, v):
        return ((y - m[None, :, None]) / jnp.sqrt(v + eps)[None, :, None]
                * g[None, :, None] + b[None, :, None])

    p = (K - 1) // 2
    y = _conv1d(x, params["w1"], S, p)
    y = jax.nn.relu(bn(y, *params["bn1"]))
    y = _conv1d(y, params["w2"], 1, p)
    y = bn(y, *params["bn2"])
    sc = _conv1d(x, params["ws"], S, 0)
    sc = bn(sc, *params["bns"])
    return jax.nn.relu(y + sc)


if __name__ == "__main__":
    key = jax.random.PRNGKey(0)
    B, Cin, L = 2, 4, 16          # batch, in_channels, seq_len
    Cout, K, S = 8, 3, 2          # num_filters, filter_length, subsample_length

    ks = jax.random.split(key, 16)
    x = jax.random.normal(ks[0], (B, Cin, L), jnp.float32)

    def bn_params(k0, k1, k2, k3, c):
        return (jax.random.uniform(k0, (c,), minval=0.5, maxval=1.5),   # gamma
                jax.random.normal(k1, (c,)) * 0.1,                      # beta
                jax.random.normal(k2, (c,)) * 0.1,                      # running mean
                jax.random.uniform(k3, (c,), minval=0.5, maxval=1.5))   # running var

    params = {
        "w1": jax.random.normal(ks[1], (Cout, Cin, K), jnp.float32) * 0.3,
        "w2": jax.random.normal(ks[2], (Cout, Cout, K), jnp.float32) * 0.3,
        "ws": jax.random.normal(ks[3], (Cout, Cin, 1), jnp.float32) * 0.3,
        "bn1": bn_params(ks[4], ks[5], ks[6], ks[7], Cout),
        "bn2": bn_params(ks[8], ks[9], ks[10], ks[11], Cout),
        "bns": bn_params(ks[12], ks[13], ks[14], ks[15], Cout),
    }

    ref = _reference(x, params, K, S)

    # batch_block=1 -> 2 "parallel" grid steps (feeds megacore / both v7x TensorCores)
    out = jax.block_until_ready(
        resnet_basic_block(x, params, kernel_size=K, stride=S, batch_block=1))
    np.testing.assert_allclose(np.asarray(out), np.asarray(ref), rtol=1e-4, atol=1e-4)

    # batch-blocked path: Bt=2 samples stacked along the matmul lane axis
    out2 = jax.block_until_ready(
        resnet_basic_block(x, params, kernel_size=K, stride=S, batch_block=2))
    np.testing.assert_allclose(np.asarray(out2), np.asarray(ref), rtol=1e-4, atol=1e-4)

    # stride-1 path (skips the polyphase transpose entirely)
    ref_s1 = _reference(x, params, K, 1)
    out_s1 = jax.block_until_ready(
        resnet_basic_block(x, params, kernel_size=K, stride=1, batch_block=1))
    np.testing.assert_allclose(np.asarray(out_s1), np.asarray(ref_s1), rtol=1e-4, atol=1e-4)

    # bf16 compute path (f32 accumulation + f32 epilogue); looser tolerance for bf16
    out_bf = jax.block_until_ready(
        resnet_basic_block(x, params, kernel_size=K, stride=S, batch_block=2,
                           compute_dtype=jnp.bfloat16))
    np.testing.assert_allclose(np.asarray(out_bf), np.asarray(ref), rtol=1e-1, atol=1e-1)

    print("KERNEL_OK")
</pallas_src>

<mosaic_0001>
module attributes {stable_mosaic.version = 11 : i64} {
  func.func @kernel(%arg0: i32, %arg1: memref<1x2x8x129xf32, #tpu.memory_space<vmem>>, %arg2: memref<16x24xf32, #tpu.memory_space<vmem>>, %arg3: memref<16x1xf32, #tpu.memory_space<vmem>>, %arg4: memref<8x24xf32, #tpu.memory_space<vmem>>, %arg5: memref<8x1xf32, #tpu.memory_space<vmem>>, %arg6: memref<1x8x128xf32, #tpu.memory_space<vmem>>, %arg7: memref<24x128xf32, #tpu.memory_space<vmem>>, %arg8: memref<24x128xf32, #tpu.memory_space<vmem>>) attributes {dimension_semantics = [#tpu.dimension_semantics<parallel>], iteration_bounds = array<i64: 2>, scalar_prefetch = 0 : i64, scratch_operands = 2 : i64, tpu.core_type = #tpu.core_type<tc>, window_params = [{transform_indices = @transform_0, window_bounds = array<i64: 1, 2, 8, 129>}, {pipeline_mode = #tpu.pipeline_mode<synchronous>, transform_indices = @transform_1, window_bounds = array<i64: 16, 24>}, {pipeline_mode = #tpu.pipeline_mode<synchronous>, transform_indices = @transform_2, window_bounds = array<i64: 16, 1>}, {pipeline_mode = #tpu.pipeline_mode<synchronous>, transform_indices = @transform_3, window_bounds = array<i64: 8, 24>}, {pipeline_mode = #tpu.pipeline_mode<synchronous>, transform_indices = @transform_4, window_bounds = array<i64: 8, 1>}, {transform_indices = @transform_5, window_bounds = array<i64: 1, 8, 128>}]} {
    %c0 = arith.constant 0 : index
    %c0_0 = arith.constant 0 : index
    %c0_1 = arith.constant 0 : index
    %c0_2 = arith.constant 0 : index
    %0 = vector.load %arg1[%c0, %c0_0, %c0_1, %c0_2] : memref<1x2x8x129xf32, #tpu.memory_space<vmem>>, vector<1x1x8x128xf32>
    %1 = vector.shape_cast %0 : vector<1x1x8x128xf32> to vector<8x128xf32>
    %c0_3 = arith.constant 0 : index
    %c0_4 = arith.constant 0 : index
    %2 = vector.load %arg7[%c0_3, %c0_4] : memref<24x128xf32, #tpu.memory_space<vmem>>, vector<8x128xf32>
    tpu.vector_store %arg7[%c0_3, %c0_4], %1 {strides = array<i32>} : memref<24x128xf32, #tpu.memory_space<vmem>>, vector<8x128xf32>,
    %c0_5 = arith.constant 0 : index
    %c1 = arith.constant 1 : index
    %c0_6 = arith.constant 0 : index
    %c0_7 = arith.constant 0 : index
    %3 = vector.load %arg1[%c0_5, %c1, %c0_6, %c0_7] : memref<1x2x8x129xf32, #tpu.memory_space<vmem>>, vector<1x1x8x128xf32>
    %4 = vector.shape_cast %3 : vector<1x1x8x128xf32> to vector<8x128xf32>
    %c8 = arith.constant 8 : index
    %c0_8 = arith.constant 0 : index
    %5 = vector.load %arg7[%c8, %c0_8] : memref<24x128xf32, #tpu.memory_space<vmem>>, vector<8x128xf32>
    tpu.vector_store %arg7[%c8, %c0_8], %4 {strides = array<i32>} : memref<24x128xf32, #tpu.memory_space<vmem>>, vector<8x128xf32>,
    %c0_9 = arith.constant 0 : index
    %c0_10 = arith.constant 0 : index
    %c0_11 = arith.constant 0 : index
    %c1_12 = arith.constant 1 : index
    %6 = vector.load %arg1[%c0_9, %c0_10, %c0_11, %c1_12] : memref<1x2x8x129xf32, #tpu.memory_space<vmem>>, vector<1x1x8x128xf32>
    %7 = vector.shape_cast %6 : vector<1x1x8x128xf32> to vector<8x128xf32>
    %c16 = arith.constant 16 : index
    %c0_13 = arith.constant 0 : index
    %8 = vector.load %arg7[%c16, %c0_13] : memref<24x128xf32, #tpu.memory_space<vmem>>, vector<8x128xf32>
    tpu.vector_store %arg7[%c16, %c0_13], %7 {strides = array<i32>} : memref<24x128xf32, #tpu.memory_space<vmem>>, vector<8x128xf32>,
    %c0_14 = arith.constant 0 : index
    %c0_15 = arith.constant 0 : index
    %9 = vector.load %arg2[%c0_14, %c0_15] : memref<16x24xf32, #tpu.memory_space<vmem>>, vector<16x24xf32>
    %c0_16 = arith.constant 0 : index
    %c0_17 = arith.constant 0 : index
    %10 = vector.load %arg7[%c0_16, %c0_17] : memref<24x128xf32, #tpu.memory_space<vmem>>, vector<24x128xf32>
    %cst = arith.constant dense<0.000000e+00> : vector<16x128xf32>
    %11 = tpu.matmul %9, %10, %cst {dimension_numbers = #tpu.dot_dimension_numbers<[1], [0], [0], [1], [0, 0, 1, 1], [], []>} : vector<16x24xf32>, vector<24x128xf32>, vector<16x128xf32> -> vector<16x128xf32>
    %c0_18 = arith.constant 0 : index
    %c0_19 = arith.constant 0 : index
    %12 = vector.load %arg3[%c0_18, %c0_19] : memref<16x1xf32, #tpu.memory_space<vmem>>, vector<16x1xf32>
    %13 = vector.broadcast %12 : vector<16x1xf32> to vector<16x128xf32>
    %14 = arith.addf %11, %13 : vector<16x128xf32>
    %15 = vector.extract_strided_slice %14 {offsets = [0, 0], sizes = [8, 128], strides = [1, 1]} : vector<16x128xf32> to vector<8x128xf32>
    %cst_20 = arith.constant 0.000000e+00 : f32
    %16 = vector.broadcast %cst_20 : f32 to vector<8x128xf32>
    %17 = arith.maximumf %15, %16 : vector<8x128xf32>
    %18 = vector.extract_strided_slice %14 {offsets = [8, 0], sizes = [8, 128], strides = [1, 1]} : vector<16x128xf32> to vector<8x128xf32>
    %cst_21 = arith.constant 0.000000e+00 : f32
    %19 = vector.broadcast %cst_21 : f32 to vector<24x128xf32>
    %c0_22 = arith.constant 0 : index
    %c0_23 = arith.constant 0 : index
    %20 = vector.load %arg8[%c0_22, %c0_23] : memref<24x128xf32, #tpu.memory_space<vmem>>, vector<24x128xf32>
    tpu.vector_store %arg8[%c0_22, %c0_23], %19 {strides = array<i32>} : memref<24x128xf32, #tpu.memory_space<vmem>>, vector<24x128xf32>,
    %21 = vector.extract_strided_slice %17 {offsets = [0, 0], sizes = [8, 8], strides = [1, 1]} : vector<8x128xf32> to vector<8x8xf32>
    %c0_24 = arith.constant 0 : index
    %c1_25 = arith.constant 1 : index
    %22 = vector.load %arg8[%c0_24, %c1_25] : memref<24x128xf32, #tpu.memory_space<vmem>>, vector<8x8xf32>
    tpu.vector_store %arg8[%c0_24, %c1_25], %21 {strides = array<i32>} : memref<24x128xf32, #tpu.memory_space<vmem>>, vector<8x8xf32>,
    %23 = vector.extract_strided_slice %17 {offsets = [0, 0], sizes = [8, 8], strides = [1, 1]} : vector<8x128xf32> to vector<8x8xf32>
    %c8_26 = arith.constant 8 : index
    %c0_27 = arith.constant 0 : index
    %24 = vector.load %arg8[%c8_26, %c0_27] : memref<24x128xf32, #tpu.memory_space<vmem>>, vector<8x8xf32>
    tpu.vector_store %arg8[%c8_26, %c0_27], %23 {strides = array<i32>} : memref<24x128xf32, #tpu.memory_space<vmem>>, vector<8x8xf32>,
    %25 = vector.extract_strided_slice %17 {offsets = [0, 1], sizes = [8, 7], strides = [1, 1]} : vector<8x128xf32> to vector<8x7xf32>
    %c16_28 = arith.constant 16 : index
    %c0_29 = arith.constant 0 : index
    %26 = vector.load %arg8[%c16_28, %c0_29] : memref<24x128xf32, #tpu.memory_space<vmem>>, vector<8x7xf32>
    tpu.vector_store %arg8[%c16_28, %c0_29], %25 {strides = array<i32>} : memref<24x128xf32, #tpu.memory_space<vmem>>, vector<8x7xf32>,
    %c0_30 = arith.constant 0 : index
    %c0_31 = arith.constant 0 : index
    %27 = vector.load %arg4[%c0_30, %c0_31] : memref<8x24xf32, #tpu.memory_space<vmem>>, vector<8x24xf32>
    %c0_32 = arith.constant 0 : index
    %c0_33 = arith.constant 0 : index
    %28 = vector.load %arg8[%c0_32, %c0_33] : memref<24x128xf32, #tpu.memory_space<vmem>>, vector<24x128xf32>
    %cst_34 = arith.constant dense<0.000000e+00> : vector<8x128xf32>
    %29 = tpu.matmul %27, %28, %cst_34 {dimension_numbers = #tpu.dot_dimension_numbers<[1], [0], [0], [1], [0, 0, 1, 1], [], []>} : vector<8x24xf32>, vector<24x128xf32>, vector<8x128xf32> -> vector<8x128xf32>
    %c0_35 = arith.constant 0 : index
    %c0_36 = arith.constant 0 : index
    %30 = vector.load %arg5[%c0_35, %c0_36] : memref<8x1xf32, #tpu.memory_space<vmem>>, vector<8x1xf32>
    %31 = vector.broadcast %30 : vector<8x1xf32> to vector<8x128xf32>
    %32 = arith.addf %29, %31 : vector<8x128xf32>
    %33 = arith.addf %32, %18 : vector<8x128xf32>
    %cst_37 = arith.constant 0.000000e+00 : f32
    %34 = vector.broadcast %cst_37 : f32 to vector<8x128xf32>
    %35 = arith.maximumf %33, %34 : vector<8x128xf32>
    %c0_38 = arith.constant 0 : index
    %c0_39 = arith.constant 0 : index
    %c0_40 = arith.constant 0 : index
    %36 = vector.load %arg6[%c0_38, %c0_39, %c0_40] : memref<1x8x128xf32, #tpu.memory_space<vmem>>, vector<1x8x128xf32>
    %37 = vector.shape_cast %36 : vector<1x8x128xf32> to vector<8x128xf32>
    %38 = vector.shape_cast %35 : vector<8x128xf32> to vector<1x8x128xf32>
    tpu.vector_store %arg6[%c0_38, %c0_39, %c0_40], %38 {strides = array<i32>} : memref<1x8x128xf32, #tpu.memory_space<vmem>>, vector<1x8x128xf32>,
    return
  }
  func.func @transform_0(%arg0: i32) -> (i32, i32, i32, i32) {
    %c0_i32 = arith.constant 0 : i32
    %c0_i32_0 = arith.constant 0 : i32
    %c0_i32_1 = arith.constant 0 : i32
    %c0_i32_2 = arith.constant 0 : i32
    return %arg0, %c0_i32, %c0_i32_0, %c0_i32_1 : i32, i32, i32, i32
  }
  func.func @transform_1(%arg0: i32) -> (i32, i32) {
    %c0_i32 = arith.constant 0 : i32
    %c0_i32_0 = arith.constant 0 : i32
    %c0_i32_1 = arith.constant 0 : i32
    return %c0_i32, %c0_i32_0 : i32, i32
  }
  func.func @transform_2(%arg0: i32) -> (i32, i32) {
    %c0_i32 = arith.constant 0 : i32
    %c0_i32_0 = arith.constant 0 : i32
    %c0_i32_1 = arith.constant 0 : i32
    return %c0_i32, %c0_i32_0 : i32, i32
  }
  func.func @transform_3(%arg0: i32) -> (i32, i32) {
    %c0_i32 = arith.constant 0 : i32
    %c0_i32_0 = arith.constant 0 : i32
    %c0_i32_1 = arith.constant 0 : i32
    return %c0_i32, %c0_i32_0 : i32, i32
  }
  func.func @transform_4(%arg0: i32) -> (i32, i32) {
    %c0_i32 = arith.constant 0 : i32
    %c0_i32_0 = arith.constant 0 : i32
    %c0_i32_1 = arith.constant 0 : i32
    return %c0_i32, %c0_i32_0 : i32, i32
  }
  func.func @transform_5(%arg0: i32) -> (i32, i32, i32) {
    %c0_i32 = arith.constant 0 : i32
    %c0_i32_0 = arith.constant 0 : i32
    %c0_i32_1 = arith.constant 0 : i32
    return %arg0, %c0_i32, %c0_i32_0 : i32, i32, i32
  }
}

</mosaic_0001>

<llo_original>
// kernel: tpu_custom_call.1
$region0: #{tpu_custom_call.1}
  #allocation0 [shape = 'u32[]', space=smem, size = 0x4, offset = 0x4, fixed_abs, tag = 'smem constant byte address 0x4 - core index']
  #allocation1 [shape = 'u32[144,128]{1,0:T(1,128)}', space=vmem, size = 0x12000, scoped, tag = 'internal scratch']
  #allocation2 [shape = 'f32[24,128]{1,0:T(8,128)}', space=vmem, size = 0x3000, scoped, tag = 'scratch operand']
  #allocation3 [shape = 'f32[24,128]{1,0:T(8,128)}', space=vmem, size = 0x3000, scoped, tag = 'scratch operand']
  %s0 = inlined_call_operand.hbm [shape: f32[2,2,8,129], index: 0, kind: input, shape index: {}]
  %s1 = inlined_call_operand.vmem [shape: f32[16,24], index: 1, kind: input, shape index: {}]
  %s2 = inlined_call_operand.vmem [shape: f32[16,1], index: 2, kind: input, shape index: {}]
  %s3 = inlined_call_operand.vmem [shape: f32[8,24], index: 3, kind: input, shape index: {}]
  %s4 = inlined_call_operand.vmem [shape: f32[8,1], index: 4, kind: input, shape index: {}]
  %s5 = inlined_call_operand.hbm [shape: f32[2,8,128], index: 5, kind: output, shape index: {}]
  %s6 = sld [smem:[#allocation0]]
  $region57: #{tpu_custom_call.1} parent=0
    _
  %s8 = ssub.s32 1, %s6
  %s9 = scalar_select 0, %s8, %s6
  $region1: #{tpu_custom_call.1} parent=0
    #allocation4 [shape = 'u8[32768]{0}', space=vmem, size = 0x8000, scoped, tag = 'input window, operand 0']
    #allocation5 [shape = 's32[2]{0}', space=sflag, size = 0x8, scoped, tag = 'scoped memory for tpu_custom_call.1']
    #allocation6 [shape = 's32[2]{0}', space=sflag, size = 0x8, scoped, tag = 'scoped memory for tpu_custom_call.1']
    #allocation7 [shape = 'u8[8192]{0}', space=vmem, size = 0x2000, scoped, tag = 'output window, operand 0']
    %10 = vsyncpa [#allocation5], 0
    %s11 = scalar_lea.sflag [#allocation5], 1
    %12 = vsyncpa %s11, 0
    %13 = vsyncpa [#allocation6], 0
    %s14 = scalar_lea.sflag [#allocation6], 1
    %15 = vsyncpa %s14, 0
    loop: start=0, step=1, limit=4
    $region2: #{tpu_custom_call.1} parent=1 // loop_pre_header
      _
    $region3: #{tpu_custom_call.1} parent=1 // loop_header
      %s17 = sphi 0, %s21
      %p18 = scmp.ge.s32.totalorder %s17, 4
      %s27 = sphi 0, %s29
      %s30 = sphi 0, %s27
      %s31 = sphi 0, %s30
      %s47 = sphi 0, %s31
      %s51 = sphi 0, %s51
      %s53 = sphi 0, %s51
      %s54 = sphi 0, %s53
      %s68 = sphi 0, %s54
      %s72 = sphi 0, %s72
      %s74 = sphi 0, %s72
      %s75 = sphi 0, %s74
      %s89 = sphi 0, %s75
      %s93 = sphi 0, %s93
      %s95 = sphi 0, %s93
      %s96 = sphi 0, %s95
      %s110 = sphi 0, %s96
      %s114 = sphi 0, %s114
      %s116 = sphi 0, %s114
      %s117 = sphi 0, %s116
      %s131 = sphi 0, %s117
      %s137 = sphi 0, %s139
      %s140 = sphi 0, %s137
      %s141 = sphi 0, %s140
      %s157 = sphi 0, %s141
    $region4: #{tpu_custom_call.1} parent=1 // loop_header_branch
      %20 = sbr.rel (%p18) target = $region8
    $region5: #{tpu_custom_call.1} parent=1 // loop_body
      %s22 = ssub.s32 %s17, 1
      %s23 = ssub.s32 %s17, 2
      %s24 = sadd.s32 %s17, 1
      %s25 = ssub.s32 %s17, %s24
      %p26 = scmp.eq.s32.totalorder %s25, 0
      %s28 = sadd.s32 %s27, 1
      %s29 = scalar_select %p26, %s27, %s28
      %p32 = pneg %p26
      %p33 = scmp.eq.s32.totalorder %s17, 1
      %p34 = por %p32, %p33
      %p35 = scmp.ne.s32.totalorder %s27, %s30
      %p36 = scmp.eq.s32.totalorder %s17, 0
      %p37 = por %p35, %p36
      %p38 = scmp.ne.s32.totalorder %s27, %s30
      %p39 = scmp.eq.s32.totalorder %s22, 1
      %p40 = por %p38, %p39
      %p41 = scmp.ne.s32.totalorder %s30, %s31
      %p42 = scmp.eq.s32.totalorder %s22, 0
      %p43 = por %p41, %p42
      %p44 = scmp.ne.s32.totalorder %s30, %s31
      %p45 = scmp.eq.s32.totalorder %s23, 1
      %p46 = por %p44, %p45
      %p48 = scmp.ne.s32.totalorder %s31, %s47
      %p49 = scmp.eq.s32.totalorder %s23, 0
      %p50 = por %p48, %p49
      %s52 = sadd.s32 %s51, 1
      %p55 = scmp.eq.s32.totalorder %s17, 1
      %p56 = scmp.ne.s32.totalorder %s51, %s53
      %p57 = scmp.eq.s32.totalorder %s17, 0
      %p58 = por %p56, %p57
      %p59 = scmp.ne.s32.totalorder %s51, %s53
      %p60 = scmp.eq.s32.totalorder %s22, 1
      %p61 = por %p59, %p60
      %p62 = scmp.ne.s32.totalorder %s53, %s54
      %p63 = scmp.eq.s32.totalorder %s22, 0
      %p64 = por %p62, %p63
      %p65 = scmp.ne.s32.totalorder %s53, %s54
      %p66 = scmp.eq.s32.totalorder %s23, 1
      %p67 = por %p65, %p66
      %p69 = scmp.ne.s32.totalorder %s54, %s68
      %p70 = scmp.eq.s32.totalorder %s23, 0
      %p71 = por %p69, %p70
      %s73 = sadd.s32 %s72, 1
      %p76 = scmp.eq.s32.totalorder %s17, 1
      %p77 = scmp.ne.s32.totalorder %s72, %s74
      %p78 = scmp.eq.s32.totalorder %s17, 0
      %p79 = por %p77, %p78
      %p80 = scmp.ne.s32.totalorder %s72, %s74
      %p81 = scmp.eq.s32.totalorder %s22, 1
      %p82 = por %p80, %p81
      %p83 = scmp.ne.s32.totalorder %s74, %s75
      %p84 = scmp.eq.s32.totalorder %s22, 0
      %p85 = por %p83, %p84
      %p86 = scmp.ne.s32.totalorder %s74, %s75
      %p87 = scmp.eq.s32.totalorder %s23, 1
      %p88 = por %p86, %p87
      %p90 = scmp.ne.s32.totalorder %s75, %s89
      %p91 = scmp.eq.s32.totalorder %s23, 0
      %p92 = por %p90, %p91
      %s94 = sadd.s32 %s93, 1
      %p97 = scmp.eq.s32.totalorder %s17, 1
      %p98 = scmp.ne.s32.totalorder %s93, %s95
      %p99 = scmp.eq.s32.totalorder %s17, 0
      %p100 = por %p98, %p99
      %p101 = scmp.ne.s32.totalorder %s93, %s95
      %p102 = scmp.eq.s32.totalorder %s22, 1
      %p103 = por %p101, %p102
      %p104 = scmp.ne.s32.totalorder %s95, %s96
      %p105 = scmp.eq.s32.totalorder %s22, 0
      %p106 = por %p104, %p105
      %p107 = scmp.ne.s32.totalorder %s95, %s96
      %p108 = scmp.eq.s32.totalorder %s23, 1
      %p109 = por %p107, %p108
      %p111 = scmp.ne.s32.totalorder %s96, %s110
      %p112 = scmp.eq.s32.totalorder %s23, 0
      %p113 = por %p111, %p112
      %s115 = sadd.s32 %s114, 1
      %p118 = scmp.eq.s32.totalorder %s17, 1
      %p119 = scmp.ne.s32.totalorder %s114, %s116
      %p120 = scmp.eq.s32.totalorder %s17, 0
      %p121 = por %p119, %p120
      %p122 = scmp.ne.s32.totalorder %s114, %s116
      %p123 = scmp.eq.s32.totalorder %s22, 1
      %p124 = por %p122, %p123
      %p125 = scmp.ne.s32.totalorder %s116, %s117
      %p126 = scmp.eq.s32.totalorder %s22, 0
      %p127 = por %p125, %p126
      %p128 = scmp.ne.s32.totalorder %s116, %s117
      %p129 = scmp.eq.s32.totalorder %s23, 1
      %p130 = por %p128, %p129
      %p132 = scmp.ne.s32.totalorder %s117, %s131
      %p133 = scmp.eq.s32.totalorder %s23, 0
      %p134 = por %p132, %p133
      %s135 = ssub.s32 %s17, %s24
      %p136 = scmp.eq.s32.totalorder %s135, 0
      %s138 = sadd.s32 %s137, 1
      %s139 = scalar_select %p136, %s137, %s138
      %p142 = pneg %p136
      %p143 = scmp.eq.s32.totalorder %s17, 1
      %p144 = por %p142, %p143
      %p145 = scmp.ne.s32.totalorder %s137, %s140
      %p146 = scmp.eq.s32.totalorder %s17, 0
      %p147 = por %p145, %p146
      %p148 = scmp.ne.s32.totalorder %s137, %s140
      %p149 = scmp.eq.s32.totalorder %s22, 1
      %p150 = por %p148, %p149
      %p151 = scmp.ne.s32.totalorder %s140, %s141
      %p152 = scmp.eq.s32.totalorder %s22, 0
      %p153 = por %p151, %p152
      %p154 = scmp.ne.s32.totalorder %s140, %s141
      %p155 = scmp.eq.s32.totalorder %s23, 1
      %p156 = por %p154, %p155
      %p158 = scmp.ne.s32.totalorder %s141, %s157
      %p159 = scmp.eq.s32.totalorder %s23, 0
      %p160 = por %p158, %p159
      %p161 = scmp.le.s32.totalorder 1, %s17
      %p162 = scmp.lt.s32.totalorder %s17, 3
      %p163 = pnand %p161, %p162
      %p164 = pneg %p163
      // Predicated region
      $region9: #{tpu_custom_call.1} parent=5 // pred_check
        _
      $region10: #{tpu_custom_call.1} parent=5 // pred_check_branch
        %166 = sbr.rel (%p163) target = $region12
      $region11: #{tpu_custom_call.1} parent=5 // pred_region
        %s167 = ssub.s32 %s17, 1
        // Predicated region
        $region13: #{tpu_custom_call.1} parent=11 // pred_check
          %p168 = pneg %p64
        $region14: #{tpu_custom_call.1} parent=11 // pred_check_branch
          %170 = sbr.rel (%p168) target = $region16
        $region15: #{tpu_custom_call.1} parent=11 // pred_region
          _
        $region16: #{tpu_custom_call.1} parent=11 // pred_fallthru
          _
        // Predicated region
        $region17: #{tpu_custom_call.1} parent=11 // pred_check
          %p171 = pneg %p85
        $region18: #{tpu_custom_call.1} parent=11 // pred_check_branch
          %173 = sbr.rel (%p171) target = $region20
        $region19: #{tpu_custom_call.1} parent=11 // pred_region
          _
        $region20: #{tpu_custom_call.1} parent=11 // pred_fallthru
          _
        // Predicated region
        $region21: #{tpu_custom_call.1} parent=11 // pred_check
          %p174 = pneg %p106
        $region22: #{tpu_custom_call.1} parent=11 // pred_check_branch
          %176 = sbr.rel (%p174) target = $region24
        $region23: #{tpu_custom_call.1} parent=11 // pred_region
          _
        $region24: #{tpu_custom_call.1} parent=11 // pred_fallthru
          _
        // Predicated region
        $region25: #{tpu_custom_call.1} parent=11 // pred_check
          %p177 = pneg %p127
        $region26: #{tpu_custom_call.1} parent=11 // pred_check_branch
          %179 = sbr.rel (%p177) target = $region28
        $region27: #{tpu_custom_call.1} parent=11 // pred_region
          _
        $region28: #{tpu_custom_call.1} parent=11 // pred_fallthru
          _
      $region12: #{tpu_custom_call.1} parent=5 // pred_fallthru
        _
      %p180 = scmp.lt.s32.totalorder %s17, 2
      // Predicated region
      $region29: #{tpu_custom_call.1} parent=5 // pred_check
        %p181 = pneg %p180
      $region30: #{tpu_custom_call.1} parent=5 // pred_check_branch
        %183 = sbr.rel (%p181) target = $region32
      $region31: #{tpu_custom_call.1} parent=5 // pred_region
        // Predicated region
        $region33: #{tpu_custom_call.1} parent=31 // pred_check
          %p184 = pneg %p37
        $region34: #{tpu_custom_call.1} parent=31 // pred_check_branch
          %186 = sbr.rel (%p184) target = $region36
        $region35: #{tpu_custom_call.1} parent=31 // pred_region
          %s187 = sand.u32 %s27, 1
          %s188 = scalar_lea.sflag [#allocation5], %s187
          %s189 = sand.u32 %s27, 1
          %s190 = smul.addr %s189, 32
          %s191 = scalar_lea.vmem [#allocation4], %s190
          %s193 = ssub.s32 512, 512
          %194 = vsyncadd %s188, %s193
          %s195 = smul.addr %s17, 4
          %s196 = smul.addr %s195, 128
          %s197 = scalar_lea.hbm %s0, %s196
          %s198 = sshll.u32 %s191, 4
          %s199 = int_to_ptr.vmem [resolvable:$true] %s198
          %204 = dma.hbm_to_vmem [thread:$0]  %s197, 512, %s199, %s188, 256, 256, 16
        $region36: #{tpu_custom_call.1} parent=31 // pred_fallthru
          _
      $region32: #{tpu_custom_call.1} parent=5 // pred_fallthru
        _
      %p205 = scmp.le.s32.totalorder 1, %s17
      %p206 = scmp.lt.s32.totalorder %s17, 3
      %p207 = pnand %p205, %p206
      %p208 = pneg %p207
      // Predicated region
      $region37: #{tpu_custom_call.1} parent=5 // pred_check
        _
      $region38: #{tpu_custom_call.1} parent=5 // pred_check_branch
        %210 = sbr.rel (%p207) target = $region40
      $region39: #{tpu_custom_call.1} parent=5 // pred_region
        %s211 = ssub.s32 %s17, 1
        %s212 = sand.u32 %s30, 1
        %s213 = scalar_lea.sflag [#allocation5], %s212
        %s214 = sand.u32 %s30, 1
        %s215 = smul.addr %s214, 32
        %s216 = scalar_lea.vmem [#allocation4], %s215
        // Predicated region
        $region41: #{tpu_custom_call.1} parent=39 // pred_check
          %p217 = pneg %p43
        $region42: #{tpu_custom_call.1} parent=39 // pred_check_branch
          %219 = sbr.rel (%p217) target = $region44
        $region43: #{tpu_custom_call.1} parent=39 // pred_region
          %220 = dma.done %s213, 512
        $region44: #{tpu_custom_call.1} parent=39 // pred_fallthru
          _
        %s221 = sand.u32 %s30, 1
        %s222 = scalar_lea.sflag [#allocation5], %s221
        %s223 = sand.u32 %s30, 1
        %s224 = smul.addr %s223, 32
        %s225 = scalar_lea.vmem [#allocation4], %s224
        %p226 = pneg %p43
        %p227 = pneg %p40
        %p228 = pneg %p64
        %p229 = pneg %p61
        %p230 = pneg %p85
        %p231 = pneg %p82
        %p232 = pneg %p106
        %p233 = pneg %p103
        %p234 = pneg %p127
        %p235 = pneg %p124
        %p236 = pneg %p153
        %p237 = pneg %p150
        %s238 = sand.u32 %s140, 1
        %s239 = scalar_lea.sflag [#allocation6], %s238
        %s240 = sand.u32 %s140, 1
        %s241 = smul.addr %s240, 8
        %s242 = scalar_lea.vmem [#allocation7], %s241
        %v243 = vld [vmem:[%s216] sm:$0xff]
        %244 = vst [vmem:[#allocation2] sm:$0xff] %v243
        %s245 = scalar_lea.vmem %s216, 16 [#allocation4]
        %v246 = vld [vmem:[%s245] sm:$0xff]
        %247 = vst [vmem:[#allocation2 + $0x8] sm:$0xff] %v246
        %v248 = vld [vmem:[%s216] sm:$0xff]
        %v249 = vld [vmem:[%s216 + $0x8] sm:$0xff]
        %252 = vrot.lane.b32.xlu0 %v248, 127
        %v253 = vpop.permute.xlu0 %252
        %254 = vrot.lane.b32.xlu0 %v249, 127
        %v255 = vpop.permute.xlu0 %254
        %vm256 = vcmask 1039360
        %v257 = vsel %vm256, %v253, %v255
        %259 = vst [vmem:[#allocation2 + $0x10] sm:$0xff] %v257
        %v260 = vld [vmem:[%s1] sm:$0xff]
        %v261 = vld [vmem:[%s1 + $0x8] sm:$0xff]
        %v262 = vld [vmem:[#allocation2] sm:$0xff]
        %v263 = vld [vmem:[#allocation2 + $0x8] sm:$0xff]
        %v264 = vld [vmem:[#allocation2 + $0x10] sm:$0xff]
        %v265 = vld [vmem:[%s2] sm:$0xff]
        %v266 = vld [vmem:[%s2 + $0x8] sm:$0xff]
        %268 = vset.pattern.permute.xlu0 0
        %269 = vperm.xlu0 %268, %v265
        %v270 = vpop.permute.xlu0 %269
        %273 = vset.pattern.permute.xlu0 0
        %274 = vperm.xlu0 %273, %v266
        %v275 = vpop.permute.xlu0 %274
        %vm277 = vcmask 195584
        %v279 = vsel %vm277, %v260, 0
        %v282 = vsel %vm277, %v261, 0
        %284 = vmatprep.subr.mxu0 0.0
        %285 = vmatpush1.msra.mxu0 0.0
        %286 = vmatprep.subr.mxu0 0.0
        %287 = vmatpush1.msra.mxu0 0.0
        %288 = vmatprep.subr.mxu0 0.0
        %289 = vmatpush1.msra.mxu0 0.0
        %290 = vmatprep.subr.mxu0 0.0
        %291 = vmatpush1.msra.mxu0 0.0
        %292 = vmatprep.subr.mxu0 0.0
        %293 = vmatpush1.msra.mxu0 0.0
        %294 = vmatprep.subr.mxu0 0.0
        %295 = vmatpush1.msra.mxu0 0.0
        %296 = vmatprep.subr.mxu0 0.0
        %297 = vmatpush1.msra.mxu0 0.0
        %298 = vmatprep.subr.mxu0 0.0
        %299 = vmatpush1.msra.mxu0 0.0
        %300 = vmatprep.subr.mxu0 0.0
        %301 = vmatpush1.msra.mxu0 0.0
        %302 = vmatprep.subr.mxu0 0.0
        %303 = vmatpush1.msra.mxu0 0.0
        %304 = vmatprep.subr.mxu0 0.0
        %305 = vmatpush1.msra.mxu0 0.0
        %306 = vmatprep.subr.mxu0 0.0
        %307 = vmatpush1.msra.mxu0 0.0
        %308 = vmatprep.subr.mxu0 0.0
        %309 = vmatpush1.msra.mxu0 0.0
        %310 = vmatprep.subr.mxu0 0.0
        %311 = vmatpush1.msra.mxu0 %v264
        %312 = vmatprep.subr.mxu0 0.0
        %313 = vmatpush1.msra.mxu0 %v263
        %314 = vmatprep.subr.mxu0 0.0
        %315 = vmatpush1.msra.mxu0 %v262
        %316 = vmatprep.subr.mxu0 0.0
        %317 = vmatpush2.msra.mxu0 0.0
        %318 = vmatprep.subr.mxu0 0.0
        %319 = vmatpush2.msra.mxu0 0.0
        %320 = vmatprep.subr.mxu0 0.0
        %321 = vmatpush2.msra.mxu0 0.0
        %322 = vmatprep.subr.mxu0 0.0
        %323 = vmatpush2.msra.mxu0 0.0
        %324 = vmatprep.subr.mxu0 0.0
        %325 = vmatpush2.msra.mxu0 0.0
        %326 = vmatprep.subr.mxu0 0.0
        %327 = vmatpush2.msra.mxu0 0.0
        %328 = vmatprep.subr.mxu0 0.0
        %329 = vmatpush2.msra.mxu0 0.0
        %330 = vmatprep.subr.mxu0 0.0
        %331 = vmatpush2.msra.mxu0 0.0
        %332 = vmatprep.subr.mxu0 0.0
        %333 = vmatpush2.msra.mxu0 0.0
        %334 = vmatprep.subr.mxu0 0.0
        %335 = vmatpush2.msra.mxu0 0.0
        %336 = vmatprep.subr.mxu0 0.0
        %337 = vmatpush2.msra.mxu0 0.0
        %338 = vmatprep.subr.mxu0 0.0
        %339 = vmatpush2.msra.mxu0 0.0
        %340 = vmatprep.subr.mxu0 0.0
        %341 = vmatpush2.msra.mxu0 0.0
        %342 = vmatprep.subr.mxu0 0.0
        %343 = vmatpush2.msra.mxu0 0.0
        %344 = vmatprep.subr.mxu0 0.0
        %345 = vmatpush2.msra.mxu0 0.0
        %346 = vmatprep.subr.mxu0 0.0
        %347 = vmatpush2.msra.mxu0 0.0
        %348 = vmatprep.mubr.f32.mxu0 0.0
        %349 = vmatmul.mubr.f32.gmra.mxu0 %v279
        %v350 = vpop.f32.mrf.mxu0
        %v351 = vadd.f32 %v270, %v350
        %v352 = vpop.f32.mrf.mxu0
        %353 = vmatprep.mubr.f32.mxu0 0.0
        %354 = vmatmul.mubr.f32.gmra.mxu0 %v282
        %v355 = vpop.f32.mrf.mxu0
        %v356 = vadd.f32 %v275, %v355
        %v357 = vpop.f32.mrf.mxu0
        %358 = vdwg.mxu0
        %v359 = vmax.f32 %v351, 0.0
        %360 = vst [vmem:[#allocation3] sm:$0xff] 0.0
        %361 = vst [vmem:[#allocation3 + $0x8] sm:$0xff] 0.0
        %362 = vst [vmem:[#allocation3 + $0x10] sm:$0xff] 0.0
        %364 = vrot.lane.b32.xlu0 %v359, 1
        %v365 = vpop.permute.xlu0 %364
        %vm367 = vcmask 72712
        %368 = vst.msk [vmem:[#allocation3] sm:$0xff] %vm367, %v365
        %vm369 = vcmask 64512
        %370 = vst.msk [vmem:[#allocation3 + $0x8] sm:$0xff] %vm369, %v359
        %371 = vrot.lane.b32.xlu0 %v359, 127
        %v372 = vpop.permute.xlu0 %371
        %vm374 = vcmask 56320
        %375 = vst.msk [vmem:[#allocation3 + $0x10] sm:$0xff] %vm374, %v372
        %v376 = vld [vmem:[%s3] sm:$0xff]
        %v377 = vld [vmem:[#allocation3] sm:$0xff]
        %v378 = vld [vmem:[#allocation3 + $0x8] sm:$0xff]
        %v379 = vld [vmem:[#allocation3 + $0x10] sm:$0xff]
        %v380 = vld [vmem:[%s4] sm:$0xff]
        %382 = vset.pattern.permute.xlu0 0
        %383 = vperm.xlu0 %382, %v380
        %v384 = vpop.permute.xlu0 %383
        %v387 = vsel %vm277, %v376, 0
        %389 = vmatprep.subr.mxu0 0.0
        %390 = vmatpush1.msra.mxu0 0.0
        %391 = vmatprep.subr.mxu0 0.0
        %392 = vmatpush1.msra.mxu0 0.0
        %393 = vmatprep.subr.mxu0 0.0
        %394 = vmatpush1.msra.mxu0 0.0
        %395 = vmatprep.subr.mxu0 0.0
        %396 = vmatpush1.msra.mxu0 0.0
        %397 = vmatprep.subr.mxu0 0.0
        %398 = vmatpush1.msra.mxu0 0.0
        %399 = vmatprep.subr.mxu0 0.0
        %400 = vmatpush1.msra.mxu0 0.0
        %401 = vmatprep.subr.mxu0 0.0
        %402 = vmatpush1.msra.mxu0 0.0
        %403 = vmatprep.subr.mxu0 0.0
        %404 = vmatpush1.msra.mxu0 0.0
        %405 = vmatprep.subr.mxu0 0.0
        %406 = vmatpush1.msra.mxu0 0.0
        %407 = vmatprep.subr.mxu0 0.0
        %408 = vmatpush1.msra.mxu0 0.0
        %409 = vmatprep.subr.mxu0 0.0
        %410 = vmatpush1.msra.mxu0 0.0
        %411 = vmatprep.subr.mxu0 0.0
        %412 = vmatpush1.msra.mxu0 0.0
        %413 = vmatprep.subr.mxu0 0.0
        %414 = vmatpush1.msra.mxu0 0.0
        %415 = vmatprep.subr.mxu0 0.0
        %416 = vmatpush1.msra.mxu0 %v379
        %417 = vmatprep.subr.mxu0 0.0
        %418 = vmatpush1.msra.mxu0 %v378
        %419 = vmatprep.subr.mxu0 0.0
        %420 = vmatpush1.msra.mxu0 %v377
        %421 = vmatprep.subr.mxu0 0.0
        %422 = vmatpush2.msra.mxu0 0.0
        %423 = vmatprep.subr.mxu0 0.0
        %424 = vmatpush2.msra.mxu0 0.0
        %425 = vmatprep.subr.mxu0 0.0
        %426 = vmatpush2.msra.mxu0 0.0
        %427 = vmatprep.subr.mxu0 0.0
        %428 = vmatpush2.msra.mxu0 0.0
        %429 = vmatprep.subr.mxu0 0.0
        %430 = vmatpush2.msra.mxu0 0.0
        %431 = vmatprep.subr.mxu0 0.0
        %432 = vmatpush2.msra.mxu0 0.0
        %433 = vmatprep.subr.mxu0 0.0
        %434 = vmatpush2.msra.mxu0 0.0
        %435 = vmatprep.subr.mxu0 0.0
        %436 = vmatpush2.msra.mxu0 0.0
        %437 = vmatprep.subr.mxu0 0.0
        %438 = vmatpush2.msra.mxu0 0.0
        %439 = vmatprep.subr.mxu0 0.0
        %440 = vmatpush2.msra.mxu0 0.0
        %441 = vmatprep.subr.mxu0 0.0
        %442 = vmatpush2.msra.mxu0 0.0
        %443 = vmatprep.subr.mxu0 0.0
        %444 = vmatpush2.msra.mxu0 0.0
        %445 = vmatprep.subr.mxu0 0.0
        %446 = vmatpush2.msra.mxu0 0.0
        %447 = vmatprep.subr.mxu0 0.0
        %448 = vmatpush2.msra.mxu0 0.0
        %449 = vmatprep.subr.mxu0 0.0
        %450 = vmatpush2.msra.mxu0 0.0
        %451 = vmatprep.subr.mxu0 0.0
        %452 = vmatpush2.msra.mxu0 0.0
        %453 = vmatprep.mubr.f32.mxu0 0.0
        %454 = vmatmul.mubr.f32.gmra.mxu0 %v387
        %v455 = vpop.f32.mrf.mxu0
        %v456 = vadd.f32 %v384, %v455
        %v457 = vpop.f32.mrf.mxu0
        %458 = vdwg.mxu0
        %v459 = vadd.f32 %v456, %v356
        %v460 = vmax.f32 %v459, 0.0
        %461 = vst [vmem:[%s242] sm:$0xff] %v460
        %s462 = sand.u32 %s140, 1
        %s463 = scalar_lea.sflag [#allocation6], %s462
        %s464 = sand.u32 %s140, 1
        %s465 = smul.addr %s464, 8
        %s466 = scalar_lea.vmem [#allocation7], %s465
        // Predicated region
        $region45: #{tpu_custom_call.1} parent=39 // pred_check
          %p467 = pneg %p150
        $region46: #{tpu_custom_call.1} parent=39 // pred_check_branch
          %469 = sbr.rel (%p467) target = $region48
        $region47: #{tpu_custom_call.1} parent=39 // pred_region
          %s471 = ssub.s32 128, 128
          %472 = vsyncadd %s463, %s471
          %s473 = smul.addr %s22, 128
          %s474 = scalar_lea.hbm %s5, %s473
          %s476 = sshll.u32 %s466, 4
          %s477 = int_to_ptr.vmem [resolvable:$true] %s476
          %479 = dma.vmem_to_hbm [thread:$0]  %s477, 128, %s474, %s463
        $region48: #{tpu_custom_call.1} parent=39 // pred_fallthru
          _
      $region40: #{tpu_custom_call.1} parent=5 // pred_fallthru
        _
      %p480 = scmp.le.s32.totalorder 2, %s17
      // Predicated region
      $region49: #{tpu_custom_call.1} parent=5 // pred_check
        %p481 = pneg %p480
      $region50: #{tpu_custom_call.1} parent=5 // pred_check_branch
        %483 = sbr.rel (%p481) target = $region52
      $region51: #{tpu_custom_call.1} parent=5 // pred_region
        %s484 = ssub.s32 %s17, 2
        // Predicated region
        $region53: #{tpu_custom_call.1} parent=51 // pred_check
          %p485 = pneg %p156
        $region54: #{tpu_custom_call.1} parent=51 // pred_check_branch
          %487 = sbr.rel (%p485) target = $region56
        $region55: #{tpu_custom_call.1} parent=51 // pred_region
          %s488 = sand.u32 %s141, 1
          %s489 = scalar_lea.sflag [#allocation6], %s488
          %s490 = sand.u32 %s141, 1
          %s491 = smul.addr %s490, 8
          %s492 = scalar_lea.vmem [#allocation7], %s491
          %493 = dma.done %s489, 128
        $region56: #{tpu_custom_call.1} parent=51 // pred_fallthru
          _
      $region52: #{tpu_custom_call.1} parent=5 // pred_fallthru
        _
    $region6: #{tpu_custom_call.1} parent=1 // loop_footer
      %s21 = sadd.s32 1, %s17
    $region7: #{tpu_custom_call.1} parent=1 // loop_footer_branch
      %16 = sbr.rel target = $region3
    $region8: #{tpu_custom_call.1} parent=1 // loop_exit
      _
    %494 = vsyncpa [#allocation5], 1
    %s495 = scalar_lea.sflag [#allocation5], 1
    %496 = vsyncpa %s495, 1
    %497 = vsyncpa [#allocation6], 1
    %s498 = scalar_lea.sflag [#allocation6], 1
    %499 = vsyncpa %s498, 1

</llo_original>
